<compile_context>
chip_gen: v7x
topology: tpu7x:2x2x1
jax: 0.10.0
libtpu: 0.0.40
codegen_flags: <defaults>
</compile_context>

<pallas_src>
import functools

import jax
import jax.numpy as jnp
from jax.experimental import pallas as pl
from jax.experimental.pallas import tpu as pltpu


_OUT_PAD = 128   # lane-dense output width: (val+adv) in cols [:A], sum_j adv in col A
_ROW_QUANTUM = 16  # sublane quantum valid for both f32 (8) and bf16 (16) outputs


def _round_up(n, m):
    return ((n + m - 1) // m) * m


def _dueling_kernel(
    x_ref,
    w1_ref, b1_ref,
    w2_ref, b2_ref,
    w3_ref, b3_ref,
    wh1_ref, bh1_ref,   # fused advantage|value first layers: (128, 512)
    wh2_ref, bh2_ref,   # fused, value-folded second layers, lane-padded: (512, _OUT_PAD)
    out_ref,            # (TB, _OUT_PAD): cols [:A] = value+advantage, col A = row adv-sum
    advsum_ref,         # (8, 128) f32: this tile's masked advantage sum, broadcast
    *, valid_rows, tile_rows, adv_col,
):
    cd = w1_ref.dtype  # MXU input dtype (bf16 on v6e/v7x, or f32 for the exact path)

    x = x_ref[...].astype(cd)

    # features: Linear(S,32) -> ReLU -> Linear(32,64) -> ReLU -> Linear(64,128)
    h = jnp.dot(x, w1_ref[...], preferred_element_type=jnp.float32) + b1_ref[...]
    h = jnp.maximum(h, 0.0).astype(cd)
    h = jnp.dot(h, w2_ref[...], preferred_element_type=jnp.float32) + b2_ref[...]
    h = jnp.maximum(h, 0.0).astype(cd)
    feat = jnp.dot(h, w3_ref[...], preferred_element_type=jnp.float32) + b3_ref[...]
    # NOTE: no ReLU after the last features layer (matches the PyTorch Sequential).
    feat = feat.astype(cd)

    # fused heads, layer 1: one (TB,128)@(128,512) dot instead of two (128,256) dots
    hh = jnp.dot(feat, wh1_ref[...], preferred_element_type=jnp.float32) + bh1_ref[...]
    hh = jnp.maximum(hh, 0.0).astype(cd)

    # fused heads, layer 2 (value folded into the advantage columns at pack time):
    #   cols [:A] = value + advantage,  col A = sum_j advantage[:, j],  rest zero.
    head = jnp.dot(hh, wh2_ref[...], preferred_element_type=jnp.float32) + bh2_ref[...]
    out_ref[...] = head.astype(out_ref.dtype)

    # Masked per-tile advantage partial sum (padded batch rows excluded), so the
    # wrapper never has to re-read the head from HBM to compute the global mean.
    row = (jax.lax.broadcasted_iota(jnp.int32, (tile_rows, 1), 0)
           + pl.program_id(0) * tile_rows)
    mask = (row < valid_rows).astype(jnp.float32)
    tile_sum = jnp.sum(head[:, adv_col:adv_col + 1] * mask)
    advsum_ref[...] = jnp.broadcast_to(tile_sum, (8, 128))


def prepare_params(params, matmul_dtype=jnp.bfloat16):
    """One-time parameter packing (hoisted out of the jitted forward).

    Returns a dict of arrays ready for dueling_q_forward.  matmul_dtype=bf16
    (default) uses the MXU's fast path with f32 accumulation; pass jnp.float32
    for a bit-accurate path.
    """
    f32 = jnp.float32
    A = params["wa2"].shape[1]
    H = params["wa1"].shape[1]                                        # 256
    assert A + 1 <= _OUT_PAD

    # Fused first head layer: (128, 512) = [advantage | value].
    wh1 = jnp.concatenate([params["wa1"], params["wv1"]], axis=1)     # (128, 512)
    bh1 = jnp.concatenate([params["ba1"], params["bv1"]], axis=1)     # (1, 512)

    # Fused, value-folded second layer (512, _OUT_PAD):
    #   cols [:A]: adv weights on the top block, value weights broadcast on the
    #              bottom block  ->  out[:, :A] = advantage + value,
    #   col A    : row-sums of the adv weights -> out[:, A] = sum_j advantage[:, j].
    wh2 = jnp.zeros((2 * H, _OUT_PAD), f32)
    wh2 = wh2.at[:H, :A].set(params["wa2"])
    wh2 = wh2.at[H:, :A].set(jnp.broadcast_to(params["wv2"], (H, A)))
    wh2 = wh2.at[:H, A].set(jnp.sum(params["wa2"], axis=1))
    bh2 = jnp.zeros((1, _OUT_PAD), f32)
    bh2 = bh2.at[:, :A].set(params["ba2"] + params["bv2"])            # bv2 broadcasts
    bh2 = bh2.at[:, A].set(jnp.sum(params["ba2"]))

    wd = matmul_dtype
    packed = {
        "w1": params["w1"].astype(wd), "b1": params["b1"].astype(f32),
        "w2": params["w2"].astype(wd), "b2": params["b2"].astype(f32),
        "w3": params["w3"].astype(wd), "b3": params["b3"].astype(f32),
        "wh1": wh1.astype(wd), "bh1": bh1.astype(f32),
        "wh2": wh2.astype(wd), "bh2": bh2.astype(f32),
    }
    return packed, A


@functools.partial(jax.jit, static_argnames=("action_size", "block_b"))
def dueling_q_forward(x, packed, action_size, *, block_b=2048):
    """DuelingQNetwork forward.

    x: (B, state_size) f32.  packed: output of prepare_params.  Returns
    (B, action_size) f32 Q-values with the exact PyTorch semantics
    `value + advantage - advantage.mean()` (global mean over (batch, action)).
    """
    B, S = x.shape
    A = action_size
    f32 = jnp.float32
    # bf16 head writeback when the MXU path is bf16 (halves HBM traffic);
    # the dueling mean/subtract below stays in f32.
    head_dtype = jnp.bfloat16 if packed["wh2"].dtype == jnp.bfloat16 else f32

    # --- batch tiling: tile rows multiple of 16 (f32/bf16 sublane quantum);
    # keep the tile count EVEN when >1 so v7x's two TensorCores split the
    # "parallel" batch axis evenly.
    Bq = _round_up(B, _ROW_QUANTUM)
    num_tiles = max(1, pl.cdiv(Bq, block_b))
    if num_tiles > 1:
        num_tiles = 2 * pl.cdiv(num_tiles, 2)
    TB = _round_up(pl.cdiv(Bq, num_tiles), _ROW_QUANTUM)
    B_pad = TB * num_tiles
    if B_pad != B:
        x = jnp.pad(x, ((0, B_pad - B), (0, 0)))  # padded rows masked/sliced below

    x_spec = pl.BlockSpec((TB, S), lambda i: (i, 0))
    out_spec = pl.BlockSpec((TB, _OUT_PAD), lambda i: (i, 0))
    psum_spec = pl.BlockSpec((8, 128), lambda i: (i, 0))

    def const_spec(a):  # whole array, same block every step -> DMA'd once, resident
        return pl.BlockSpec(a.shape, lambda i: (0, 0))

    weights = [packed[k] for k in
               ("w1", "b1", "w2", "b2", "w3", "b3", "wh1", "bh1", "wh2", "bh2")]

    kernel = functools.partial(
        _dueling_kernel, valid_rows=B, tile_rows=TB, adv_col=A)

    head, psums = pl.pallas_call(
        kernel,
        out_shape=(
            jax.ShapeDtypeStruct((B_pad, _OUT_PAD), head_dtype),
            jax.ShapeDtypeStruct((num_tiles * 8, 128), f32),
        ),
        grid=(num_tiles,),
        in_specs=[x_spec] + [const_spec(a) for a in weights],
        out_specs=(out_spec, psum_spec),
        compiler_params=pltpu.CompilerParams(
            dimension_semantics=("parallel",),     # batch tiles independent -> 2-TC v7x
            vmem_limit_bytes=40 * 1024 * 1024,     # covers TB=2048 on v5e's 16 MiB default
        ),
    )(x, *weights)

    # Global advantage mean from the per-tile masked partial sums (one scalar
    # per tile; no HBM re-read of the head).  Subtract stays in f32.
    adv_total = jnp.sum(psums[::8, 0])
    adv_mean = adv_total / (B * A)
    return head[:B, :A].astype(f32) - adv_mean


def init_params(key, state_size, action_size):
    """Deterministic init mimicking PyTorch nn.Linear defaults (U(-1/sqrt(in), 1/sqrt(in)))."""
    dims = [
        ("w1", "b1", state_size, 32),
        ("w2", "b2", 32, 64),
        ("w3", "b3", 64, 128),
        ("wa1", "ba1", 128, 256),
        ("wa2", "ba2", 256, action_size),
        ("wv1", "bv1", 128, 256),
        ("wv2", "bv2", 256, 1),
    ]
    params = {}
    for wname, bname, fan_in, fan_out in dims:
        key, kw, kb = jax.random.split(key, 3)
        bound = 1.0 / (fan_in ** 0.5)
        params[wname] = jax.random.uniform(
            kw, (fan_in, fan_out), jnp.float32, -bound, bound)
        params[bname] = jax.random.uniform(
            kb, (1, fan_out), jnp.float32, -bound, bound)
    return params


def reference_forward(x, p):
    """Pure-JAX f32 reference matching the PyTorch forward semantics."""
    h = jnp.maximum(x @ p["w1"] + p["b1"], 0.0)
    h = jnp.maximum(h @ p["w2"] + p["b2"], 0.0)
    feat = h @ p["w3"] + p["b3"]
    a = jnp.maximum(feat @ p["wa1"] + p["ba1"], 0.0)
    adv = a @ p["wa2"] + p["ba2"]
    v = jnp.maximum(feat @ p["wv1"] + p["bv1"], 0.0)
    val = v @ p["wv2"] + p["bv2"]
    return val + adv - jnp.mean(adv)   # NOTE: global mean, exactly like the PyTorch module


if __name__ == "__main__":
    state_size = 8
    action_size = 4

    key = jax.random.PRNGKey(0)
    key, kx = jax.random.split(key)
    params = init_params(key, state_size, action_size)

    # One-time packing (f32 exact path and bf16 MXU path).
    packed_f32, A = prepare_params(params, matmul_dtype=jnp.float32)
    packed_bf16, _ = prepare_params(params, matmul_dtype=jnp.bfloat16)

    # 1) Small batch, single grid tile, exact f32 MXU path -> tight check.
    x_small = jax.random.normal(kx, (8, state_size), jnp.float32)
    out_f32 = jax.block_until_ready(dueling_q_forward(x_small, packed_f32, A))
    ref_small = reference_forward(x_small, params)
    assert out_f32.shape == (8, action_size), out_f32.shape
    assert jnp.allclose(out_f32, ref_small, atol=5e-4, rtol=5e-4), (
        "f32 mismatch", float(jnp.max(jnp.abs(out_f32 - ref_small))))

    # 2) Larger, non-multiple-of-tile batch: exercises padding + multi-tile grid
    #    (even tile count) + masked in-kernel advantage partial sums.
    key, kx2 = jax.random.split(key)
    x_big = jax.random.normal(kx2, (300, state_size), jnp.float32)
    ref_big = reference_forward(x_big, params)

    #   2a) f32 path, tight check of tiling/padding/fusion/partial-sum correctness.
    out_big_f32 = jax.block_until_ready(
        dueling_q_forward(x_big, packed_f32, A, block_b=128))
    assert out_big_f32.shape == (300, action_size), out_big_f32.shape
    assert jnp.allclose(out_big_f32, ref_big, atol=5e-4, rtol=5e-4), (
        "tiled f32 mismatch", float(jnp.max(jnp.abs(out_big_f32 - ref_big))))

    #   2b) bf16 MXU path with bf16 head writeback, loose check vs. f32 reference.
    out_big_bf16 = jax.block_until_ready(
        dueling_q_forward(x_big, packed_bf16, A, block_b=128))
    assert out_big_bf16.shape == (300, action_size), out_big_bf16.shape
    assert jnp.allclose(out_big_bf16, ref_big, atol=3e-2, rtol=3e-2), (
        "bf16 mismatch", float(jnp.max(jnp.abs(out_big_bf16 - ref_big))))

    print("KERNEL_OK")
</pallas_src>

<mosaic_0001>
module attributes {stable_mosaic.version = 11 : i64} {
  func.func @_dueling_kernel(%arg0: i32, %arg1: memref<16x8xf32, #tpu.memory_space<vmem>>, %arg2: memref<8x32xf32, #tpu.memory_space<vmem>>, %arg3: memref<1x32xf32, #tpu.memory_space<vmem>>, %arg4: memref<32x64xf32, #tpu.memory_space<vmem>>, %arg5: memref<1x64xf32, #tpu.memory_space<vmem>>, %arg6: memref<64x128xf32, #tpu.memory_space<vmem>>, %arg7: memref<1x128xf32, #tpu.memory_space<vmem>>, %arg8: memref<128x512xf32, #tpu.memory_space<vmem>>, %arg9: memref<1x512xf32, #tpu.memory_space<vmem>>, %arg10: memref<512x128xf32, #tpu.memory_space<vmem>>, %arg11: memref<1x128xf32, #tpu.memory_space<vmem>>, %arg12: memref<16x128xf32, #tpu.memory_space<vmem>>, %arg13: memref<8x128xf32, #tpu.memory_space<vmem>>) attributes {dimension_semantics = [#tpu.dimension_semantics<parallel>], iteration_bounds = array<i64: 1>, scalar_prefetch = 0 : i64, scratch_operands = 0 : i64, tpu.core_type = #tpu.core_type<tc>, window_params = [{transform_indices = @transform_0, window_bounds = array<i64: 16, 8>}, {pipeline_mode = #tpu.pipeline_mode<synchronous>, transform_indices = @transform_1, window_bounds = array<i64: 8, 32>}, {pipeline_mode = #tpu.pipeline_mode<synchronous>, transform_indices = @transform_2, window_bounds = array<i64: 1, 32>}, {pipeline_mode = #tpu.pipeline_mode<synchronous>, transform_indices = @transform_3, window_bounds = array<i64: 32, 64>}, {pipeline_mode = #tpu.pipeline_mode<synchronous>, transform_indices = @transform_4, window_bounds = array<i64: 1, 64>}, {pipeline_mode = #tpu.pipeline_mode<synchronous>, transform_indices = @transform_5, window_bounds = array<i64: 64, 128>}, {pipeline_mode = #tpu.pipeline_mode<synchronous>, transform_indices = @transform_6, window_bounds = array<i64: 1, 128>}, {pipeline_mode = #tpu.pipeline_mode<synchronous>, transform_indices = @transform_7, window_bounds = array<i64: 128, 512>}, {pipeline_mode = #tpu.pipeline_mode<synchronous>, transform_indices = @transform_8, window_bounds = array<i64: 1, 512>}, {pipeline_mode = #tpu.pipeline_mode<synchronous>, transform_indices = @transform_9, window_bounds = array<i64: 512, 128>}, {pipeline_mode = #tpu.pipeline_mode<synchronous>, transform_indices = @transform_10, window_bounds = array<i64: 1, 128>}, {transform_indices = @transform_11, window_bounds = array<i64: 16, 128>}, {transform_indices = @transform_12, window_bounds = array<i64: 8, 128>}]} {
    %c0 = arith.constant 0 : index
    %c0_0 = arith.constant 0 : index
    %0 = vector.load %arg1[%c0, %c0_0] : memref<16x8xf32, #tpu.memory_space<vmem>>, vector<16x8xf32>
    %c0_1 = arith.constant 0 : index
    %c0_2 = arith.constant 0 : index
    %1 = vector.load %arg2[%c0_1, %c0_2] : memref<8x32xf32, #tpu.memory_space<vmem>>, vector<8x32xf32>
    %cst = arith.constant dense<0.000000e+00> : vector<16x32xf32>
    %2 = tpu.matmul %0, %1, %cst {dimension_numbers = #tpu.dot_dimension_numbers<[1], [0], [0], [1], [0, 0, 1, 1], [], []>} : vector<16x8xf32>, vector<8x32xf32>, vector<16x32xf32> -> vector<16x32xf32>
    %c0_3 = arith.constant 0 : index
    %c0_4 = arith.constant 0 : index
    %3 = vector.load %arg3[%c0_3, %c0_4] : memref<1x32xf32, #tpu.memory_space<vmem>>, vector<1x32xf32>
    %4 = vector.broadcast %3 : vector<1x32xf32> to vector<16x32xf32>
    %5 = arith.addf %2, %4 : vector<16x32xf32>
    %cst_5 = arith.constant 0.000000e+00 : f32
    %6 = vector.broadcast %cst_5 : f32 to vector<16x32xf32>
    %7 = arith.maximumf %5, %6 : vector<16x32xf32>
    %c0_6 = arith.constant 0 : index
    %c0_7 = arith.constant 0 : index
    %8 = vector.load %arg4[%c0_6, %c0_7] : memref<32x64xf32, #tpu.memory_space<vmem>>, vector<32x64xf32>
    %cst_8 = arith.constant dense<0.000000e+00> : vector<16x64xf32>
    %9 = tpu.matmul %7, %8, %cst_8 {dimension_numbers = #tpu.dot_dimension_numbers<[1], [0], [0], [1], [0, 0, 1, 1], [], []>} : vector<16x32xf32>, vector<32x64xf32>, vector<16x64xf32> -> vector<16x64xf32>
    %c0_9 = arith.constant 0 : index
    %c0_10 = arith.constant 0 : index
    %10 = vector.load %arg5[%c0_9, %c0_10] : memref<1x64xf32, #tpu.memory_space<vmem>>, vector<1x64xf32>
    %11 = vector.broadcast %10 : vector<1x64xf32> to vector<16x64xf32>
    %12 = arith.addf %9, %11 : vector<16x64xf32>
    %cst_11 = arith.constant 0.000000e+00 : f32
    %13 = vector.broadcast %cst_11 : f32 to vector<16x64xf32>
    %14 = arith.maximumf %12, %13 : vector<16x64xf32>
    %c0_12 = arith.constant 0 : index
    %c0_13 = arith.constant 0 : index
    %15 = vector.load %arg6[%c0_12, %c0_13] : memref<64x128xf32, #tpu.memory_space<vmem>>, vector<64x128xf32>
    %cst_14 = arith.constant dense<0.000000e+00> : vector<16x128xf32>
    %16 = tpu.matmul %14, %15, %cst_14 {dimension_numbers = #tpu.dot_dimension_numbers<[1], [0], [0], [1], [0, 0, 1, 1], [], []>} : vector<16x64xf32>, vector<64x128xf32>, vector<16x128xf32> -> vector<16x128xf32>
    %c0_15 = arith.constant 0 : index
    %c0_16 = arith.constant 0 : index
    %17 = vector.load %arg7[%c0_15, %c0_16] : memref<1x128xf32, #tpu.memory_space<vmem>>, vector<1x128xf32>
    %18 = vector.broadcast %17 : vector<1x128xf32> to vector<16x128xf32>
    %19 = arith.addf %16, %18 : vector<16x128xf32>
    %c0_17 = arith.constant 0 : index
    %c0_18 = arith.constant 0 : index
    %20 = vector.load %arg8[%c0_17, %c0_18] : memref<128x512xf32, #tpu.memory_space<vmem>>, vector<128x512xf32>
    %cst_19 = arith.constant dense<0.000000e+00> : vector<16x512xf32>
    %21 = tpu.matmul %19, %20, %cst_19 {dimension_numbers = #tpu.dot_dimension_numbers<[1], [0], [0], [1], [0, 0, 1, 1], [], []>} : vector<16x128xf32>, vector<128x512xf32>, vector<16x512xf32> -> vector<16x512xf32>
    %c0_20 = arith.constant 0 : index
    %c0_21 = arith.constant 0 : index
    %22 = vector.load %arg9[%c0_20, %c0_21] : memref<1x512xf32, #tpu.memory_space<vmem>>, vector<1x512xf32>
    %23 = vector.broadcast %22 : vector<1x512xf32> to vector<16x512xf32>
    %24 = arith.addf %21, %23 : vector<16x512xf32>
    %cst_22 = arith.constant 0.000000e+00 : f32
    %25 = vector.broadcast %cst_22 : f32 to vector<16x512xf32>
    %26 = arith.maximumf %24, %25 : vector<16x512xf32>
    %c0_23 = arith.constant 0 : index
    %c0_24 = arith.constant 0 : index
    %27 = vector.load %arg10[%c0_23, %c0_24] : memref<512x128xf32, #tpu.memory_space<vmem>>, vector<512x128xf32>
    %cst_25 = arith.constant dense<0.000000e+00> : vector<16x128xf32>
    %28 = tpu.matmul %26, %27, %cst_25 {dimension_numbers = #tpu.dot_dimension_numbers<[1], [0], [0], [1], [0, 0, 1, 1], [], []>} : vector<16x512xf32>, vector<512x128xf32>, vector<16x128xf32> -> vector<16x128xf32>
    %c0_26 = arith.constant 0 : index
    %c0_27 = arith.constant 0 : index
    %29 = vector.load %arg11[%c0_26, %c0_27] : memref<1x128xf32, #tpu.memory_space<vmem>>, vector<1x128xf32>
    %30 = vector.broadcast %29 : vector<1x128xf32> to vector<16x128xf32>
    %31 = arith.addf %28, %30 : vector<16x128xf32>
    %c0_28 = arith.constant 0 : index
    %c0_29 = arith.constant 0 : index
    %32 = vector.load %arg12[%c0_28, %c0_29] : memref<16x128xf32, #tpu.memory_space<vmem>>, vector<16x128xf32>
    tpu.vector_store %arg12[%c0_28, %c0_29], %31 {strides = array<i32>} : memref<16x128xf32, #tpu.memory_space<vmem>>, vector<16x128xf32>,
    %33 = tpu.iota {dimensions = array<i32: 0>} : vector<16x1xi32>
    %c16_i32 = arith.constant 16 : i32
    %34 = arith.muli %arg0, %c16_i32 : i32
    %35 = vector.broadcast %34 : i32 to vector<16x1xi32>
    %36 = arith.addi %33, %35 : vector<16x1xi32>
    %c8_i32 = arith.constant 8 : i32
    %37 = vector.broadcast %c8_i32 : i32 to vector<16x1xi32>
    %38 = arith.cmpi slt, %36, %37 : vector<16x1xi32>
    %39 = arith.extui %38 : vector<16x1xi1> to vector<16x1xi32>
    %40 = arith.sitofp %39 : vector<16x1xi32> to vector<16x1xf32>
    %41 = vector.extract_strided_slice %31 {offsets = [0, 4], sizes = [16, 1], strides = [1, 1]} : vector<16x128xf32> to vector<16x1xf32>
    %42 = arith.mulf %41, %40 : vector<16x1xf32>
    %43 = vector.shape_cast %42 : vector<16x1xf32> to vector<1x16x1xf32>
    %cst_30 = arith.constant dense<0.000000e+00> : vector<1xf32>
    %44 = vector.multi_reduction <add>, %43, %cst_30 [1, 2] : vector<1x16x1xf32> to vector<1xf32>
    %45 = vector.shape_cast %44 : vector<1xf32> to vector<1x1x1xf32>
    %46 = vector.extract %45[0, 0, 0] : f32 from vector<1x1x1xf32>
    %47 = vector.broadcast %46 : f32 to vector<8x128xf32>
    %c0_31 = arith.constant 0 : index
    %c0_32 = arith.constant 0 : index
    %48 = vector.load %arg13[%c0_31, %c0_32] : memref<8x128xf32, #tpu.memory_space<vmem>>, vector<8x128xf32>
    tpu.vector_store %arg13[%c0_31, %c0_32], %47 {strides = array<i32>} : memref<8x128xf32, #tpu.memory_space<vmem>>, vector<8x128xf32>,
    return
  }
  func.func @transform_0(%arg0: i32) -> (i32, i32) {
    %c0_i32 = arith.constant 0 : i32
    %c0_i32_0 = arith.constant 0 : i32
    return %arg0, %c0_i32 : i32, i32
  }
  func.func @transform_1(%arg0: i32) -> (i32, i32) {
    %c0_i32 = arith.constant 0 : i32
    %c0_i32_0 = arith.constant 0 : i32
    %c0_i32_1 = arith.constant 0 : i32
    return %c0_i32, %c0_i32_0 : i32, i32
  }
  func.func @transform_2(%arg0: i32) -> (i32, i32) {
    %c0_i32 = arith.constant 0 : i32
    %c0_i32_0 = arith.constant 0 : i32
    %c0_i32_1 = arith.constant 0 : i32
    return %c0_i32, %c0_i32_0 : i32, i32
  }
  func.func @transform_3(%arg0: i32) -> (i32, i32) {
    %c0_i32 = arith.constant 0 : i32
    %c0_i32_0 = arith.constant 0 : i32
    %c0_i32_1 = arith.constant 0 : i32
    return %c0_i32, %c0_i32_0 : i32, i32
  }
  func.func @transform_4(%arg0: i32) -> (i32, i32) {
    %c0_i32 = arith.constant 0 : i32
    %c0_i32_0 = arith.constant 0 : i32
    %c0_i32_1 = arith.constant 0 : i32
    return %c0_i32, %c0_i32_0 : i32, i32
  }
  func.func @transform_5(%arg0: i32) -> (i32, i32) {
    %c0_i32 = arith.constant 0 : i32
    %c0_i32_0 = arith.constant 0 : i32
    %c0_i32_1 = arith.constant 0 : i32
    return %c0_i32, %c0_i32_0 : i32, i32
  }
  func.func @transform_6(%arg0: i32) -> (i32, i32) {
    %c0_i32 = arith.constant 0 : i32
    %c0_i32_0 = arith.constant 0 : i32
    %c0_i32_1 = arith.constant 0 : i32
    return %c0_i32, %c0_i32_0 : i32, i32
  }
  func.func @transform_7(%arg0: i32) -> (i32, i32) {
    %c0_i32 = arith.constant 0 : i32
    %c0_i32_0 = arith.constant 0 : i32
    %c0_i32_1 = arith.constant 0 : i32
    return %c0_i32, %c0_i32_0 : i32, i32
  }
  func.func @transform_8(%arg0: i32) -> (i32, i32) {
    %c0_i32 = arith.constant 0 : i32
    %c0_i32_0 = arith.constant 0 : i32
    %c0_i32_1 = arith.constant 0 : i32
    return %c0_i32, %c0_i32_0 : i32, i32
  }
  func.func @transform_9(%arg0: i32) -> (i32, i32) {
    %c0_i32 = arith.constant 0 : i32
    %c0_i32_0 = arith.constant 0 : i32
    %c0_i32_1 = arith.constant 0 : i32
    return %c0_i32, %c0_i32_0 : i32, i32
  }
  func.func @transform_10(%arg0: i32) -> (i32, i32) {
    %c0_i32 = arith.constant 0 : i32
    %c0_i32_0 = arith.constant 0 : i32
    %c0_i32_1 = arith.constant 0 : i32
    return %c0_i32, %c0_i32_0 : i32, i32
  }
  func.func @transform_11(%arg0: i32) -> (i32, i32) {
    %c0_i32 = arith.constant 0 : i32
    %c0_i32_0 = arith.constant 0 : i32
    return %arg0, %c0_i32 : i32, i32
  }
  func.func @transform_12(%arg0: i32) -> (i32, i32) {
    %c0_i32 = arith.constant 0 : i32
    %c0_i32_0 = arith.constant 0 : i32
    return %arg0, %c0_i32 : i32, i32
  }
}

</mosaic_0001>

<llo_original>
// kernel: dueling_q_forward.1
$region0: #{dueling_q_forward.1}
  #allocation0 [shape = 'u32[]', space=smem, size = 0x4, offset = 0x4, fixed_abs, tag = 'smem constant byte address 0x4 - core index']
  #allocation1 [shape = 'u32[144,128]{1,0:T(1,128)}', space=vmem, size = 0x12000, scoped, tag = 'internal scratch']
  %s0 = inlined_call_operand.vmem [shape: f32[16,8], index: 0, kind: input, shape index: {}]
  %s1 = inlined_call_operand.vmem [shape: f32[8,32], index: 1, kind: input, shape index: {}]
  %s2 = inlined_call_operand.vmem [shape: f32[1,32], index: 2, kind: input, shape index: {}]
  %s3 = inlined_call_operand.vmem [shape: f32[32,64], index: 3, kind: input, shape index: {}]
  %s4 = inlined_call_operand.vmem [shape: f32[1,64], index: 4, kind: input, shape index: {}]
  %s5 = inlined_call_operand.hbm [shape: f32[64,128], index: 5, kind: input, shape index: {}]
  %s6 = inlined_call_operand.vmem [shape: f32[1,128], index: 6, kind: input, shape index: {}]
  %s7 = inlined_call_operand.hbm [shape: f32[128,512], index: 7, kind: input, shape index: {}]
  %s8 = inlined_call_operand.vmem [shape: f32[1,512], index: 8, kind: input, shape index: {}]
  %s9 = inlined_call_operand.hbm [shape: f32[512,128], index: 9, kind: input, shape index: {}]
  %s10 = inlined_call_operand.vmem [shape: f32[1,128], index: 10, kind: input, shape index: {}]
  %s11 = inlined_call_operand.vmem [shape: f32[16,128], index: 11, kind: output, shape index: {0}]
  %s12 = inlined_call_operand.vmem [shape: f32[8,128], index: 12, kind: output, shape index: {1}]
  %13 = xla_tuple %s11, %s12
  %s14 = sld [smem:[#allocation0]]
  $region74: #{dueling_q_forward.1} parent=0
    _
  %s16 = ssub.s32 1, %s14
  %s17 = scalar_select 0, %s16, %s14
  $region1: #{dueling_q_forward.1} parent=0
    #allocation2 [shape = 'u8[32768]{0}', space=vmem, size = 0x8000, scoped, tag = 'input window, operand 5, single buffered']
    #allocation3 [shape = 's32[1]{0}', space=sflag, size = 0x4, scoped, tag = 'scoped memory for dueling_q_forward.1']
    #allocation4 [shape = 'u8[262144]{0}', space=vmem, size = 0x40000, scoped, tag = 'input window, operand 7, single buffered']
    #allocation5 [shape = 's32[1]{0}', space=sflag, size = 0x4, scoped, tag = 'scoped memory for dueling_q_forward.1']
    #allocation6 [shape = 'u8[262144]{0}', space=vmem, size = 0x40000, scoped, tag = 'input window, operand 9, single buffered']
    %18 = vsyncpa [#allocation3], 0
    %19 = vsyncpa [#allocation5], 0
    // Predicated region
    $region2: #{dueling_q_forward.1} parent=1 // pred_check
      _
    $region3: #{dueling_q_forward.1} parent=1 // pred_check_branch
      %21 = sbr.rel (0) target = $region5
    $region4: #{dueling_q_forward.1} parent=1 // pred_region
      _
    $region5: #{dueling_q_forward.1} parent=1 // pred_fallthru
      _
    // Predicated region
    $region6: #{dueling_q_forward.1} parent=1 // pred_check
      _
    $region7: #{dueling_q_forward.1} parent=1 // pred_check_branch
      %23 = sbr.rel (0) target = $region9
    $region8: #{dueling_q_forward.1} parent=1 // pred_region
      _
    $region9: #{dueling_q_forward.1} parent=1 // pred_fallthru
      _
    // Predicated region
    $region10: #{dueling_q_forward.1} parent=1 // pred_check
      _
    $region11: #{dueling_q_forward.1} parent=1 // pred_check_branch
      %25 = sbr.rel (0) target = $region13
    $region12: #{dueling_q_forward.1} parent=1 // pred_region
      _
    $region13: #{dueling_q_forward.1} parent=1 // pred_fallthru
      _
    // Predicated region
    $region14: #{dueling_q_forward.1} parent=1 // pred_check
      _
    $region15: #{dueling_q_forward.1} parent=1 // pred_check_branch
      %27 = sbr.rel (0) target = $region17
    $region16: #{dueling_q_forward.1} parent=1 // pred_region
      _
    $region17: #{dueling_q_forward.1} parent=1 // pred_fallthru
      _
    // Predicated region
    $region18: #{dueling_q_forward.1} parent=1 // pred_check
      _
    $region19: #{dueling_q_forward.1} parent=1 // pred_check_branch
      %29 = sbr.rel (0) target = $region21
    $region20: #{dueling_q_forward.1} parent=1 // pred_region
      _
    $region21: #{dueling_q_forward.1} parent=1 // pred_fallthru
      _
    // Predicated region
    $region22: #{dueling_q_forward.1} parent=1 // pred_check
      _
    $region23: #{dueling_q_forward.1} parent=1 // pred_check_branch
      %31 = sbr.rel (0) target = $region25
    $region24: #{dueling_q_forward.1} parent=1 // pred_region
      %s33 = ssub.s32 1024, 1024
      %34 = vsyncadd [#allocation3], %s33
      %s35 = sshll.u32 [#allocation2], 4
      %s36 = int_to_ptr.vmem [resolvable:$true] %s35
      %41 = dma.hbm_to_vmem [thread:$0]  %s5, 1024, %s36, [#allocation3], 128, 128, 8
    $region25: #{dueling_q_forward.1} parent=1 // pred_fallthru
      _
    // Predicated region
    $region26: #{dueling_q_forward.1} parent=1 // pred_check
      _
    $region27: #{dueling_q_forward.1} parent=1 // pred_check_branch
      %43 = sbr.rel (0) target = $region29
    $region28: #{dueling_q_forward.1} parent=1 // pred_region
      _
    $region29: #{dueling_q_forward.1} parent=1 // pred_fallthru
      _
    // Predicated region
    $region30: #{dueling_q_forward.1} parent=1 // pred_check
      _
    $region31: #{dueling_q_forward.1} parent=1 // pred_check_branch
      %45 = sbr.rel (0) target = $region33
    $region32: #{dueling_q_forward.1} parent=1 // pred_region
      %s47 = ssub.s32 8192, 8192
      %48 = vsyncadd [#allocation5], %s47
      %s49 = sshll.u32 [#allocation4], 4
      %s50 = int_to_ptr.vmem [resolvable:$true] %s49
      %55 = dma.hbm_to_vmem [thread:$0]  %s7, 8192, %s50, [#allocation5], 512, 512, 32
    $region33: #{dueling_q_forward.1} parent=1 // pred_fallthru
      _
    // Predicated region
    $region34: #{dueling_q_forward.1} parent=1 // pred_check
      _
    $region35: #{dueling_q_forward.1} parent=1 // pred_check_branch
      %57 = sbr.rel (0) target = $region37
    $region36: #{dueling_q_forward.1} parent=1 // pred_region
      _
    $region37: #{dueling_q_forward.1} parent=1 // pred_fallthru
      _
    // Predicated region
    $region38: #{dueling_q_forward.1} parent=1 // pred_check
      _
    $region39: #{dueling_q_forward.1} parent=1 // pred_check_branch
      %59 = sbr.rel (0) target = $region41
    $region40: #{dueling_q_forward.1} parent=1 // pred_region
      %s61 = ssub.s32 8192, 8192
      %62 = vsyncadd [#allocation5], %s61
      %s63 = sshll.u32 [#allocation6], 4
      %s64 = int_to_ptr.vmem [resolvable:$true] %s63
      %69 = dma.hbm_to_vmem [thread:$0]  %s9, 8192, %s64, [#allocation5], 128, 128, 8
    $region41: #{dueling_q_forward.1} parent=1 // pred_fallthru
      _
    // Predicated region
    $region42: #{dueling_q_forward.1} parent=1 // pred_check
      _
    $region43: #{dueling_q_forward.1} parent=1 // pred_check_branch
      %71 = sbr.rel (0) target = $region45
    $region44: #{dueling_q_forward.1} parent=1 // pred_region
      _
    $region45: #{dueling_q_forward.1} parent=1 // pred_fallthru
      _
    // Predicated region
    $region46: #{dueling_q_forward.1} parent=1 // pred_check
      _
    $region47: #{dueling_q_forward.1} parent=1 // pred_check_branch
      %73 = sbr.rel (0) target = $region49
    $region48: #{dueling_q_forward.1} parent=1 // pred_region
      %74 = dma.done [#allocation3], 1024
    $region49: #{dueling_q_forward.1} parent=1 // pred_fallthru
      _
    // Predicated region
    $region50: #{dueling_q_forward.1} parent=1 // pred_check
      _
    $region51: #{dueling_q_forward.1} parent=1 // pred_check_branch
      %76 = sbr.rel (0) target = $region53
    $region52: #{dueling_q_forward.1} parent=1 // pred_region
      %77 = dma.done [#allocation5], 8192
    $region53: #{dueling_q_forward.1} parent=1 // pred_fallthru
      _
    // Predicated region
    $region54: #{dueling_q_forward.1} parent=1 // pred_check
      _
    $region55: #{dueling_q_forward.1} parent=1 // pred_check_branch
      %79 = sbr.rel (0) target = $region57
    $region56: #{dueling_q_forward.1} parent=1 // pred_region
      %80 = dma.done [#allocation5], 8192
    $region57: #{dueling_q_forward.1} parent=1 // pred_fallthru
      _
    %v81 = vld [vmem:[%s0] sm:$0xff]
    %v82 = vld [vmem:[%s0 + $0x8] sm:$0xff]
    %v83 = vld [vmem:[%s1] sm:$0xff]
    %v84 = vld [vmem:[%s2] sm:$0x1]
    %v86 = vlaneseq
    %v87 = vshrl.u32 %v86, 7
    %v88 = vsub.s32 0, %v87
    %v89 = vrot.slane %v84, %v88
    %vm91 = vcmask 64512
    %v93 = vsel %vm91, %v81, 0
    %v96 = vsel %vm91, %v82, 0
    %98 = vmatprep.subr.mxu0 0.0
    %99 = vmatpush1.msra.mxu0 %v83
    %100 = vmatprep.subr.mxu0 0.0
    %101 = vmatpush1.msra.mxu0 0.0
    %102 = vmatprep.subr.mxu0 0.0
    %103 = vmatpush1.msra.mxu0 0.0
    %104 = vmatprep.subr.mxu0 0.0
    %105 = vmatpush1.msra.mxu0 0.0
    %106 = vmatprep.subr.mxu0 0.0
    %107 = vmatpush1.msra.mxu0 0.0
    %108 = vmatprep.subr.mxu0 0.0
    %109 = vmatpush1.msra.mxu0 0.0
    %110 = vmatprep.subr.mxu0 0.0
    %111 = vmatpush1.msra.mxu0 0.0
    %112 = vmatprep.subr.mxu0 0.0
    %113 = vmatpush1.msra.mxu0 0.0
    %114 = vmatprep.subr.mxu0 0.0
    %115 = vmatpush1.msra.mxu0 0.0
    %116 = vmatprep.subr.mxu0 0.0
    %117 = vmatpush1.msra.mxu0 0.0
    %118 = vmatprep.subr.mxu0 0.0
    %119 = vmatpush1.msra.mxu0 0.0
    %120 = vmatprep.subr.mxu0 0.0
    %121 = vmatpush1.msra.mxu0 0.0
    %122 = vmatprep.subr.mxu0 0.0
    %123 = vmatpush1.msra.mxu0 0.0
    %124 = vmatprep.subr.mxu0 0.0
    %125 = vmatpush1.msra.mxu0 0.0
    %126 = vmatprep.subr.mxu0 0.0
    %127 = vmatpush1.msra.mxu0 0.0
    %128 = vmatprep.subr.mxu0 0.0
    %129 = vmatpush1.msra.mxu0 0.0
    %130 = vmatprep.subr.mxu0 0.0
    %131 = vmatpush1.msra.mxu0 0.0
    %132 = vmatprep.subr.mxu0 0.0
    %133 = vmatpush1.msra.mxu0 0.0
    %134 = vmatprep.subr.mxu0 0.0
    %135 = vmatpush1.msra.mxu0 0.0
    %136 = vmatprep.subr.mxu0 0.0
    %137 = vmatpush1.msra.mxu0 0.0
    %138 = vmatprep.subr.mxu0 0.0
    %139 = vmatpush1.msra.mxu0 0.0
    %140 = vmatprep.subr.mxu0 0.0
    %141 = vmatpush1.msra.mxu0 0.0
    %142 = vmatprep.subr.mxu0 0.0
    %143 = vmatpush1.msra.mxu0 0.0
    %144 = vmatprep.subr.mxu0 0.0
    %145 = vmatpush1.msra.mxu0 0.0
    %146 = vmatprep.subr.mxu0 0.0
    %147 = vmatpush1.msra.mxu0 0.0
    %148 = vmatprep.subr.mxu0 0.0
    %149 = vmatpush1.msra.mxu0 0.0
    %150 = vmatprep.subr.mxu0 0.0
    %151 = vmatpush1.msra.mxu0 0.0
    %152 = vmatprep.subr.mxu0 0.0
    %153 = vmatpush1.msra.mxu0 0.0
    %154 = vmatprep.subr.mxu0 0.0
    %155 = vmatpush1.msra.mxu0 0.0
    %156 = vmatprep.subr.mxu0 0.0
    %157 = vmatpush1.msra.mxu0 0.0
    %158 = vmatprep.subr.mxu0 0.0
    %159 = vmatpush1.msra.mxu0 0.0
    %160 = vmatprep.subr.mxu0 0.0
    %161 = vmatpush1.msra.mxu0 0.0
    %162 = vmatprep.mubr.f32.mxu0 0.0
    %163 = vmatmul.mubr.f32.gmra.mrb[0].mxu0 %v93
    %v164 = vpop.f32.mrb[0].mxu0
    %v165 = vadd.f32 %v89, %v164
    %v166 = vpop.f32.mrb[0].mxu0
    %167 = vmatprep.mubr.f32.mxu0 0.0
    %168 = vmatmul.mubr.f32.gmra.mrb[0].mxu0 %v96
    %v169 = vpop.f32.mrb[0].mxu0
    %v170 = vadd.f32 %v89, %v169
    %v171 = vpop.f32.mrb[0].mxu0
    %172 = vdwg.mxu0
    %v173 = vmax.f32 %v165, 0.0
    %v174 = vmax.f32 %v170, 0.0
    %v175 = vld [vmem:[%s3] sm:$0xff]
    %v176 = vld [vmem:[%s3 + $0x8] sm:$0xff]
    %v177 = vld [vmem:[%s3 + $0x10] sm:$0xff]
    %v178 = vld [vmem:[%s3 + $0x18] sm:$0xff]
    %v179 = vld [vmem:[%s4] sm:$0x1]
    %v181 = vlaneseq
    %v182 = vshrl.u32 %v181, 7
    %v183 = vsub.s32 0, %v182
    %v184 = vrot.slane %v179, %v183
    %vm186 = vcmask 261120
    %v188 = vsel %vm186, %v173, 0
    %v191 = vsel %vm186, %v174, 0
    %193 = vmatprep.subr.mxu0 0.0
    %194 = vmatpush1.msra.mxu0 %v175
    %195 = vmatprep.subr.mxu0 0.0
    %196 = vmatpush1.msra.mxu0 %v176
    %197 = vmatprep.subr.mxu0 0.0
    %198 = vmatpush1.msra.mxu0 %v177
    %199 = vmatprep.subr.mxu0 0.0
    %200 = vmatpush1.msra.mxu0 %v178
    %201 = vmatprep.subr.mxu0 0.0
    %202 = vmatpush1.msra.mxu0 0.0
    %203 = vmatprep.subr.mxu0 0.0
    %204 = vmatpush1.msra.mxu0 0.0
    %205 = vmatprep.subr.mxu0 0.0
    %206 = vmatpush1.msra.mxu0 0.0
    %207 = vmatprep.subr.mxu0 0.0
    %208 = vmatpush1.msra.mxu0 0.0
    %209 = vmatprep.subr.mxu0 0.0
    %210 = vmatpush1.msra.mxu0 0.0
    %211 = vmatprep.subr.mxu0 0.0
    %212 = vmatpush1.msra.mxu0 0.0
    %213 = vmatprep.subr.mxu0 0.0
    %214 = vmatpush1.msra.mxu0 0.0
    %215 = vmatprep.subr.mxu0 0.0
    %216 = vmatpush1.msra.mxu0 0.0
    %217 = vmatprep.subr.mxu0 0.0
    %218 = vmatpush1.msra.mxu0 0.0
    %219 = vmatprep.subr.mxu0 0.0
    %220 = vmatpush1.msra.mxu0 0.0
    %221 = vmatprep.subr.mxu0 0.0
    %222 = vmatpush1.msra.mxu0 0.0
    %223 = vmatprep.subr.mxu0 0.0
    %224 = vmatpush1.msra.mxu0 0.0
    %225 = vmatprep.subr.mxu0 0.0
    %226 = vmatpush1.msra.mxu0 0.0
    %227 = vmatprep.subr.mxu0 0.0
    %228 = vmatpush1.msra.mxu0 0.0
    %229 = vmatprep.subr.mxu0 0.0
    %230 = vmatpush1.msra.mxu0 0.0
    %231 = vmatprep.subr.mxu0 0.0
    %232 = vmatpush1.msra.mxu0 0.0
    %233 = vmatprep.subr.mxu0 0.0
    %234 = vmatpush1.msra.mxu0 0.0
    %235 = vmatprep.subr.mxu0 0.0
    %236 = vmatpush1.msra.mxu0 0.0
    %237 = vmatprep.subr.mxu0 0.0
    %238 = vmatpush1.msra.mxu0 0.0
    %239 = vmatprep.subr.mxu0 0.0
    %240 = vmatpush1.msra.mxu0 0.0
    %241 = vmatprep.subr.mxu0 0.0
    %242 = vmatpush1.msra.mxu0 0.0
    %243 = vmatprep.subr.mxu0 0.0
    %244 = vmatpush1.msra.mxu0 0.0
    %245 = vmatprep.subr.mxu0 0.0
    %246 = vmatpush1.msra.mxu0 0.0
    %247 = vmatprep.subr.mxu0 0.0
    %248 = vmatpush1.msra.mxu0 0.0
    %249 = vmatprep.subr.mxu0 0.0
    %250 = vmatpush1.msra.mxu0 0.0
    %251 = vmatprep.subr.mxu0 0.0
    %252 = vmatpush1.msra.mxu0 0.0
    %253 = vmatprep.subr.mxu0 0.0
    %254 = vmatpush1.msra.mxu0 0.0
    %255 = vmatprep.subr.mxu0 0.0
    %256 = vmatpush1.msra.mxu0 0.0
    %257 = vmatprep.mubr.f32.mxu0 0.0
    %258 = vmatmul.mubr.f32.gmra.mrb[0].mxu0 %v188
    %v259 = vpop.f32.mrb[0].mxu0
    %v260 = vadd.f32 %v184, %v259
    %v261 = vpop.f32.mrb[0].mxu0
    %262 = vmatprep.mubr.f32.mxu0 0.0
    %263 = vmatmul.mubr.f32.gmra.mrb[0].mxu0 %v191
    %v264 = vpop.f32.mrb[0].mxu0
    %v265 = vadd.f32 %v184, %v264
    %v266 = vpop.f32.mrb[0].mxu0
    %267 = vdwg.mxu0
    %v268 = vmax.f32 %v260, 0.0
    %v269 = vmax.f32 %v265, 0.0
    %v270 = vld [vmem:[#allocation2] sm:$0xff]
    %v271 = vld [vmem:[#allocation2 + $0x8] sm:$0xff]
    %v272 = vld [vmem:[#allocation2 + $0x10] sm:$0xff]
    %v273 = vld [vmem:[#allocation2 + $0x18] sm:$0xff]
    %v274 = vld [vmem:[#allocation2 + $0x20] sm:$0xff]
    %v275 = vld [vmem:[#allocation2 + $0x28] sm:$0xff]
    %v276 = vld [vmem:[#allocation2 + $0x30] sm:$0xff]
    %v277 = vld [vmem:[#allocation2 + $0x38] sm:$0xff]
    %v278 = vld [vmem:[%s6] sm:$0x1]
    %v280 = vlaneseq
    %v281 = vshrl.u32 %v280, 7
    %v282 = vsub.s32 0, %v281
    %v283 = vrot.slane %v278, %v282
    %vm285 = vcmask 523264
    %v287 = vsel %vm285, %v268, 0
    %v290 = vsel %vm285, %v269, 0
    %292 = vmatprep.subr.mxu0 0.0
    %293 = vmatpush1.msra.mxu0 %v270
    %294 = vmatprep.subr.mxu0 0.0
    %295 = vmatpush1.msra.mxu0 %v271
    %296 = vmatprep.subr.mxu0 0.0
    %297 = vmatpush1.msra.mxu0 %v272
    %298 = vmatprep.subr.mxu0 0.0
    %299 = vmatpush1.msra.mxu0 %v273
    %300 = vmatprep.subr.mxu0 0.0
    %301 = vmatpush1.msra.mxu0 %v274
    %302 = vmatprep.subr.mxu0 0.0
    %303 = vmatpush1.msra.mxu0 %v275
    %304 = vmatprep.subr.mxu0 0.0
    %305 = vmatpush1.msra.mxu0 %v276
    %306 = vmatprep.subr.mxu0 0.0
    %307 = vmatpush1.msra.mxu0 %v277
    %308 = vmatprep.subr.mxu0 0.0
    %309 = vmatpush1.msra.mxu0 0.0
    %310 = vmatprep.subr.mxu0 0.0
    %311 = vmatpush1.msra.mxu0 0.0
    %312 = vmatprep.subr.mxu0 0.0
    %313 = vmatpush1.msra.mxu0 0.0
    %314 = vmatprep.subr.mxu0 0.0
    %315 = vmatpush1.msra.mxu0 0.0
    %316 = vmatprep.subr.mxu0 0.0
    %317 = vmatpush1.msra.mxu0 0.0
    %318 = vmatprep.subr.mxu0 0.0
    %319 = vmatpush1.msra.mxu0 0.0
    %320 = vmatprep.subr.mxu0 0.0
    %321 = vmatpush1.msra.mxu0 0.0
    %322 = vmatprep.subr.mxu0 0.0
    %323 = vmatpush1.msra.mxu0 0.0
    %324 = vmatprep.subr.mxu0 0.0
    %325 = vmatpush1.msra.mxu0 0.0
    %326 = vmatprep.subr.mxu0 0.0
    %327 = vmatpush1.msra.mxu0 0.0
    %328 = vmatprep.subr.mxu0 0.0
    %329 = vmatpush1.msra.mxu0 0.0
    %330 = vmatprep.subr.mxu0 0.0
    %331 = vmatpush1.msra.mxu0 0.0
    %332 = vmatprep.subr.mxu0 0.0
    %333 = vmatpush1.msra.mxu0 0.0
    %334 = vmatprep.subr.mxu0 0.0
    %335 = vmatpush1.msra.mxu0 0.0
    %336 = vmatprep.subr.mxu0 0.0
    %337 = vmatpush1.msra.mxu0 0.0
    %338 = vmatprep.subr.mxu0 0.0
    %339 = vmatpush1.msra.mxu0 0.0
    %340 = vmatprep.subr.mxu0 0.0
    %341 = vmatpush1.msra.mxu0 0.0
    %342 = vmatprep.subr.mxu0 0.0
    %343 = vmatpush1.msra.mxu0 0.0
    %344 = vmatprep.subr.mxu0 0.0
    %345 = vmatpush1.msra.mxu0 0.0
    %346 = vmatprep.subr.mxu0 0.0
    %347 = vmatpush1.msra.mxu0 0.0
    %348 = vmatprep.subr.mxu0 0.0
    %349 = vmatpush1.msra.mxu0 0.0
    %350 = vmatprep.subr.mxu0 0.0
    %351 = vmatpush1.msra.mxu0 0.0
    %352 = vmatprep.subr.mxu0 0.0
    %353 = vmatpush1.msra.mxu0 0.0
    %354 = vmatprep.subr.mxu0 0.0
    %355 = vmatpush1.msra.mxu0 0.0
    %356 = vmatprep.mubr.f32.mxu0 0.0
    %357 = vmatmul.mubr.f32.gmra.mrb[0].mxu0 %v287
    %v358 = vpop.f32.mrb[0].mxu0
    %v359 = vadd.f32 %v283, %v358
    %v360 = vpop.f32.mrb[0].mxu0
    %361 = vmatprep.mubr.f32.mxu0 0.0
    %362 = vmatmul.mubr.f32.gmra.mrb[0].mxu0 %v290
    %v363 = vpop.f32.mrb[0].mxu0
    %v364 = vadd.f32 %v283, %v363
    %v365 = vpop.f32.mrb[0].mxu0
    %366 = vdwg.mxu0
    %v367 = vld [vmem:[#allocation4] sm:$0xff]
    %v368 = vld [vmem:[#allocation4 + $0x8] sm:$0xff]
    %v369 = vld [vmem:[#allocation4 + $0x10] sm:$0xff]
    %v370 = vld [vmem:[#allocation4 + $0x18] sm:$0xff]
    %v371 = vld [vmem:[#allocation4 + $0x20] sm:$0xff]
    %v372 = vld [vmem:[#allocation4 + $0x28] sm:$0xff]
    %v373 = vld [vmem:[#allocation4 + $0x30] sm:$0xff]
    %v374 = vld [vmem:[#allocation4 + $0x38] sm:$0xff]
    %v375 = vld [vmem:[#allocation4 + $0x40] sm:$0xff]
    %v376 = vld [vmem:[#allocation4 + $0x48] sm:$0xff]
    %v377 = vld [vmem:[#allocation4 + $0x50] sm:$0xff]
    %v378 = vld [vmem:[#allocation4 + $0x58] sm:$0xff]
    %v379 = vld [vmem:[#allocation4 + $0x60] sm:$0xff]
    %v380 = vld [vmem:[#allocation4 + $0x68] sm:$0xff]
    %v381 = vld [vmem:[#allocation4 + $0x70] sm:$0xff]
    %v382 = vld [vmem:[#allocation4 + $0x78] sm:$0xff]
    %v383 = vld [vmem:[#allocation4 + $0x80] sm:$0xff]
    %v384 = vld [vmem:[#allocation4 + $0x88] sm:$0xff]
    %v385 = vld [vmem:[#allocation4 + $0x90] sm:$0xff]
    %v386 = vld [vmem:[#allocation4 + $0x98] sm:$0xff]
    %v387 = vld [vmem:[#allocation4 + $0xa0] sm:$0xff]
    %v388 = vld [vmem:[#allocation4 + $0xa8] sm:$0xff]
    %v389 = vld [vmem:[#allocation4 + $0xb0] sm:$0xff]
    %v390 = vld [vmem:[#allocation4 + $0xb8] sm:$0xff]
    %v391 = vld [vmem:[#allocation4 + $0xc0] sm:$0xff]
    %v392 = vld [vmem:[#allocation4 + $0xc8] sm:$0xff]
    %v393 = vld [vmem:[#allocation4 + $0xd0] sm:$0xff]
    %v394 = vld [vmem:[#allocation4 + $0xd8] sm:$0xff]
    %v395 = vld [vmem:[#allocation4 + $0xe0] sm:$0xff]
    %v396 = vld [vmem:[#allocation4 + $0xe8] sm:$0xff]
    %v397 = vld [vmem:[#allocation4 + $0xf0] sm:$0xff]
    %v398 = vld [vmem:[#allocation4 + $0xf8] sm:$0xff]
    %v399 = vld [vmem:[#allocation4 + $0x100] sm:$0xff]
    %v400 = vld [vmem:[#allocation4 + $0x108] sm:$0xff]
    %v401 = vld [vmem:[#allocation4 + $0x110] sm:$0xff]
    %v402 = vld [vmem:[#allocation4 + $0x118] sm:$0xff]
    %v403 = vld [vmem:[#allocation4 + $0x120] sm:$0xff]
    %v404 = vld [vmem:[#allocation4 + $0x128] sm:$0xff]
    %v405 = vld [vmem:[#allocation4 + $0x130] sm:$0xff]
    %v406 = vld [vmem:[#allocation4 + $0x138] sm:$0xff]
    %v407 = vld [vmem:[#allocation4 + $0x140] sm:$0xff]
    %v408 = vld [vmem:[#allocation4 + $0x148] sm:$0xff]
    %v409 = vld [vmem:[#allocation4 + $0x150] sm:$0xff]
    %v410 = vld [vmem:[#allocation4 + $0x158] sm:$0xff]
    %v411 = vld [vmem:[#allocation4 + $0x160] sm:$0xff]
    %v412 = vld [vmem:[#allocation4 + $0x168] sm:$0xff]
    %v413 = vld [vmem:[#allocation4 + $0x170] sm:$0xff]
    %v414 = vld [vmem:[#allocation4 + $0x178] sm:$0xff]
    %v415 = vld [vmem:[#allocation4 + $0x180] sm:$0xff]
    %v416 = vld [vmem:[#allocation4 + $0x188] sm:$0xff]
    %v417 = vld [vmem:[#allocation4 + $0x190] sm:$0xff]
    %v418 = vld [vmem:[#allocation4 + $0x198] sm:$0xff]
    %v419 = vld [vmem:[#allocation4 + $0x1a0] sm:$0xff]
    %v420 = vld [vmem:[#allocation4 + $0x1a8] sm:$0xff]
    %v421 = vld [vmem:[#allocation4 + $0x1b0] sm:$0xff]
    %v422 = vld [vmem:[#allocation4 + $0x1b8] sm:$0xff]
    %v423 = vld [vmem:[#allocation4 + $0x1c0] sm:$0xff]
    %v424 = vld [vmem:[#allocation4 + $0x1c8] sm:$0xff]
    %v425 = vld [vmem:[#allocation4 + $0x1d0] sm:$0xff]
    %v426 = vld [vmem:[#allocation4 + $0x1d8] sm:$0xff]
    %v427 = vld [vmem:[#allocation4 + $0x1e0] sm:$0xff]
    %v428 = vld [vmem:[#allocation4 + $0x1e8] sm:$0xff]
    %v429 = vld [vmem:[#allocation4 + $0x1f0] sm:$0xff]
    %v430 = vld [vmem:[#allocation4 + $0x1f8] sm:$0xff]
    %v431 = vld [vmem:[%s8] sm:$0xf]
    %v433 = vlaneseq
    %v434 = vshrl.u32 %v433, 7
    %v435 = vsub.s32 0, %v434
    %v436 = vrot.slane %v431, %v435
    %v437 = vlaneseq
    %v438 = vshrl.u32 %v437, 7
    %v439 = vsub.s32 1, %v438
    %v440 = vrot.slane %v431, %v439
    %v441 = vlaneseq
    %v442 = vshrl.u32 %v441, 7
    %v443 = vsub.s32 2, %v442
    %v444 = vrot.slane %v431, %v443
    %v445 = vlaneseq
    %v446 = vshrl.u32 %v445, 7
    %v447 = vsub.s32 3, %v446
    %v448 = vrot.slane %v431, %v447
    %453 = vmatprep.subr.mxu0 %v368
    %454 = vmatpush1.msra.mxu0 %v367
    %455 = vmatprep.subr.mxu0 %v372
    %456 = vmatpush1.msra.mxu0 %v371
    %457 = vmatprep.subr.mxu0 %v376
    %458 = vmatpush1.msra.mxu0 %v375
    %459 = vmatprep.subr.mxu0 %v380
    %460 = vmatpush1.msra.mxu0 %v379
    %461 = vmatprep.subr.mxu0 %v384
    %462 = vmatpush1.msra.mxu0 %v383
    %463 = vmatprep.subr.mxu0 %v388
    %464 = vmatpush1.msra.mxu0 %v387
    %465 = vmatprep.subr.mxu0 %v392
    %466 = vmatpush1.msra.mxu0 %v391
    %467 = vmatprep.subr.mxu0 %v396
    %468 = vmatpush1.msra.mxu0 %v395
    %469 = vmatprep.subr.mxu0 %v400
    %470 = vmatpush1.msra.mxu0 %v399
    %471 = vmatprep.subr.mxu0 %v404
    %472 = vmatpush1.msra.mxu0 %v403
    %473 = vmatprep.subr.mxu0 %v408
    %474 = vmatpush1.msra.mxu0 %v407
    %475 = vmatprep.subr.mxu0 %v412
    %476 = vmatpush1.msra.mxu0 %v411
    %477 = vmatprep.subr.mxu0 %v416
    %478 = vmatpush1.msra.mxu0 %v415
    %479 = vmatprep.subr.mxu0 %v420
    %480 = vmatpush1.msra.mxu0 %v419
    %481 = vmatprep.subr.mxu0 %v424
    %482 = vmatpush1.msra.mxu0 %v423
    %483 = vmatprep.subr.mxu0 %v428
    %484 = vmatpush1.msra.mxu0 %v427
    %485 = vmatprep.subr.mxu0 0.0
    %486 = vmatpush1.msra.mxu0 0.0
    %487 = vmatprep.subr.mxu0 0.0
    %488 = vmatpush1.msra.mxu0 0.0
    %489 = vmatprep.subr.mxu0 0.0
    %490 = vmatpush1.msra.mxu0 0.0
    %491 = vmatprep.subr.mxu0 0.0
    %492 = vmatpush1.msra.mxu0 0.0
    %493 = vmatprep.subr.mxu0 0.0
    %494 = vmatpush1.msra.mxu0 0.0
    %495 = vmatprep.subr.mxu0 0.0
    %496 = vmatpush1.msra.mxu0 0.0
    %497 = vmatprep.subr.mxu0 0.0
    %498 = vmatpush1.msra.mxu0 0.0
    %499 = vmatprep.subr.mxu0 0.0
    %500 = vmatpush1.msra.mxu0 0.0
    %501 = vmatprep.subr.mxu0 0.0
    %502 = vmatpush1.msra.mxu0 0.0
    %503 = vmatprep.subr.mxu0 0.0
    %504 = vmatpush1.msra.mxu0 0.0
    %505 = vmatprep.subr.mxu0 0.0
    %506 = vmatpush1.msra.mxu0 0.0
    %507 = vmatprep.subr.mxu0 0.0
    %508 = vmatpush1.msra.mxu0 0.0
    %509 = vmatprep.subr.mxu0 0.0
    %510 = vmatpush1.msra.mxu0 0.0
    %511 = vmatprep.subr.mxu0 0.0
    %512 = vmatpush1.msra.mxu0 0.0
    %513 = vmatprep.subr.mxu0 0.0
    %514 = vmatpush1.msra.mxu0 0.0
    %515 = vmatprep.subr.mxu0 0.0
    %516 = vmatpush1.msra.mxu0 0.0
    %517 = vmatprep.mubr.f32.mxu0 0.0
    %518 = vmatmul.mubr.f32.gmra.mrb[0].mxu0 %v359
    %v519 = vpop.f32.mrb[0].mxu0
    %v520 = vadd.f32 %v436, %v519
    %v521 = vpop.f32.mrb[0].mxu0
    %v522 = vadd.f32 %v440, %v521
    %523 = vmatprep.mubr.f32.mxu0 0.0
    %524 = vmatmul.mubr.f32.gmra.mrb[0].mxu0 %v364
    %v525 = vpop.f32.mrb[0].mxu0
    %v526 = vadd.f32 %v436, %v525
    %v527 = vpop.f32.mrb[0].mxu0
    %v528 = vadd.f32 %v440, %v527
    %529 = vdwg.mxu0
    %530 = vmatprep.subr.mxu0 %v370
    %531 = vmatpush1.msra.mxu0 %v369
    %532 = vmatprep.subr.mxu0 %v374
    %533 = vmatpush1.msra.mxu0 %v373
    %534 = vmatprep.subr.mxu0 %v378
    %535 = vmatpush1.msra.mxu0 %v377
    %536 = vmatprep.subr.mxu0 %v382
    %537 = vmatpush1.msra.mxu0 %v381
    %538 = vmatprep.subr.mxu0 %v386
    %539 = vmatpush1.msra.mxu0 %v385
    %540 = vmatprep.subr.mxu0 %v390
    %541 = vmatpush1.msra.mxu0 %v389
    %542 = vmatprep.subr.mxu0 %v394
    %543 = vmatpush1.msra.mxu0 %v393
    %544 = vmatprep.subr.mxu0 %v398
    %545 = vmatpush1.msra.mxu0 %v397
    %546 = vmatprep.subr.mxu0 %v402
    %547 = vmatpush1.msra.mxu0 %v401
    %548 = vmatprep.subr.mxu0 %v406
    %549 = vmatpush1.msra.mxu0 %v405
    %550 = vmatprep.subr.mxu0 %v410
    %551 = vmatpush1.msra.mxu0 %v409
    %552 = vmatprep.subr.mxu0 %v414
    %553 = vmatpush1.msra.mxu0 %v413
    %554 = vmatprep.subr.mxu0 %v418
    %555 = vmatpush1.msra.mxu0 %v417
    %556 = vmatprep.subr.mxu0 %v422
    %557 = vmatpush1.msra.mxu0 %v421
    %558 = vmatprep.subr.mxu0 %v426
    %559 = vmatpush1.msra.mxu0 %v425
    %560 = vmatprep.subr.mxu0 %v430
    %561 = vmatpush1.msra.mxu0 %v429
    %562 = vmatprep.subr.mxu0 0.0
    %563 = vmatpush1.msra.mxu0 0.0
    %564 = vmatprep.subr.mxu0 0.0
    %565 = vmatpush1.msra.mxu0 0.0
    %566 = vmatprep.subr.mxu0 0.0
    %567 = vmatpush1.msra.mxu0 0.0
    %568 = vmatprep.subr.mxu0 0.0
    %569 = vmatpush1.msra.mxu0 0.0
    %570 = vmatprep.subr.mxu0 0.0
    %571 = vmatpush1.msra.mxu0 0.0
    %572 = vmatprep.subr.mxu0 0.0
    %573 = vmatpush1.msra.mxu0 0.0
    %574 = vmatprep.subr.mxu0 0.0
    %575 = vmatpush1.msra.mxu0 0.0
    %576 = vmatprep.subr.mxu0 0.0
    %577 = vmatpush1.msra.mxu0 0.0
    %578 = vmatprep.subr.mxu0 0.0
    %579 = vmatpush1.msra.mxu0 0.0
    %580 = vmatprep.subr.mxu0 0.0
    %581 = vmatpush1.msra.mxu0 0.0
    %582 = vmatprep.subr.mxu0 0.0
    %583 = vmatpush1.msra.mxu0 0.0
    %584 = vmatprep.subr.mxu0 0.0
    %585 = vmatpush1.msra.mxu0 0.0
    %586 = vmatprep.subr.mxu0 0.0
    %587 = vmatpush1.msra.mxu0 0.0
    %588 = vmatprep.subr.mxu0 0.0
    %589 = vmatpush1.msra.mxu0 0.0
    %590 = vmatprep.subr.mxu0 0.0
    %591 = vmatpush1.msra.mxu0 0.0
    %592 = vmatprep.subr.mxu0 0.0
    %593 = vmatpush1.msra.mxu0 0.0
    %594 = vmatprep.mubr.f32.mxu0 0.0
    %595 = vmatmul.mubr.f32.gmra.mrb[0].mxu0 %v359
    %v596 = vpop.f32.mrb[0].mxu0
    %v597 = vadd.f32 %v444, %v596
    %v598 = vpop.f32.mrb[0].mxu0
    %v599 = vadd.f32 %v448, %v598
    %600 = vmatprep.mubr.f32.mxu0 0.0
    %601 = vmatmul.mubr.f32.gmra.mrb[0].mxu0 %v364
    %v602 = vpop.f32.mrb[0].mxu0
    %v603 = vadd.f32 %v444, %v602
    %v604 = vpop.f32.mrb[0].mxu0
    %v605 = vadd.f32 %v448, %v604
    %606 = vdwg.mxu0
    %v607 = vmax.f32 %v520, 0.0
    %v608 = vmax.f32 %v522, 0.0
    %v609 = vmax.f32 %v597, 0.0
    %v610 = vmax.f32 %v599, 0.0
    %v611 = vmax.f32 %v526, 0.0
    %v612 = vmax.f32 %v528, 0.0
    %v613 = vmax.f32 %v603, 0.0
    %v614 = vmax.f32 %v605, 0.0
    %v615 = vld [vmem:[#allocation6] sm:$0xff]
    %v616 = vld [vmem:[#allocation6 + $0x8] sm:$0xff]
    %v617 = vld [vmem:[#allocation6 + $0x10] sm:$0xff]
    %v618 = vld [vmem:[#allocation6 + $0x18] sm:$0xff]
    %v619 = vld [vmem:[#allocation6 + $0x20] sm:$0xff]
    %v620 = vld [vmem:[#allocation6 + $0x28] sm:$0xff]
    %v621 = vld [vmem:[#allocation6 + $0x30] sm:$0xff]
    %v622 = vld [vmem:[#allocation6 + $0x38] sm:$0xff]
    %v623 = vld [vmem:[#allocation6 + $0x40] sm:$0xff]
    %v624 = vld [vmem:[#allocation6 + $0x48] sm:$0xff]
    %v625 = vld [vmem:[#allocation6 + $0x50] sm:$0xff]
    %v626 = vld [vmem:[#allocation6 + $0x58] sm:$0xff]
    %v627 = vld [vmem:[#allocation6 + $0x60] sm:$0xff]
    %v628 = vld [vmem:[#allocation6 + $0x68] sm:$0xff]
    %v629 = vld [vmem:[#allocation6 + $0x70] sm:$0xff]
    %v630 = vld [vmem:[#allocation6 + $0x78] sm:$0xff]
    %v631 = vld [vmem:[#allocation6 + $0x80] sm:$0xff]
    %v632 = vld [vmem:[#allocation6 + $0x88] sm:$0xff]
    %v633 = vld [vmem:[#allocation6 + $0x90] sm:$0xff]
    %v634 = vld [vmem:[#allocation6 + $0x98] sm:$0xff]
    %v635 = vld [vmem:[#allocation6 + $0xa0] sm:$0xff]
    %v636 = vld [vmem:[#allocation6 + $0xa8] sm:$0xff]
    %v637 = vld [vmem:[#allocation6 + $0xb0] sm:$0xff]
    %v638 = vld [vmem:[#allocation6 + $0xb8] sm:$0xff]
    %v639 = vld [vmem:[#allocation6 + $0xc0] sm:$0xff]
    %v640 = vld [vmem:[#allocation6 + $0xc8] sm:$0xff]
    %v641 = vld [vmem:[#allocation6 + $0xd0] sm:$0xff]
    %v642 = vld [vmem:[#allocation6 + $0xd8] sm:$0xff]
    %v643 = vld [vmem:[#allocation6 + $0xe0] sm:$0xff]
    %v644 = vld [vmem:[#allocation6 + $0xe8] sm:$0xff]
    %v645 = vld [vmem:[#allocation6 + $0xf0] sm:$0xff]
    %v646 = vld [vmem:[#allocation6 + $0xf8] sm:$0xff]
    %v647 = vld [vmem:[#allocation6 + $0x100] sm:$0xff]
    %v648 = vld [vmem:[#allocation6 + $0x108] sm:$0xff]
    %v649 = vld [vmem:[#allocation6 + $0x110] sm:$0xff]
    %v650 = vld [vmem:[#allocation6 + $0x118] sm:$0xff]
    %v651 = vld [vmem:[#allocation6 + $0x120] sm:$0xff]
    %v652 = vld [vmem:[#allocation6 + $0x128] sm:$0xff]
    %v653 = vld [vmem:[#allocation6 + $0x130] sm:$0xff]
    %v654 = vld [vmem:[#allocation6 + $0x138] sm:$0xff]
    %v655 = vld [vmem:[#allocation6 + $0x140] sm:$0xff]
    %v656 = vld [vmem:[#allocation6 + $0x148] sm:$0xff]
    %v657 = vld [vmem:[#allocation6 + $0x150] sm:$0xff]
    %v658 = vld [vmem:[#allocation6 + $0x158] sm:$0xff]
    %v659 = vld [vmem:[#allocation6 + $0x160] sm:$0xff]
    %v660 = vld [vmem:[#allocation6 + $0x168] sm:$0xff]
    %v661 = vld [vmem:[#allocation6 + $0x170] sm:$0xff]
    %v662 = vld [vmem:[#allocation6 + $0x178] sm:$0xff]
    %v663 = vld [vmem:[#allocation6 + $0x180] sm:$0xff]
    %v664 = vld [vmem:[#allocation6 + $0x188] sm:$0xff]
    %v665 = vld [vmem:[#allocation6 + $0x190] sm:$0xff]
    %v666 = vld [vmem:[#allocation6 + $0x198] sm:$0xff]
    %v667 = vld [vmem:[#allocation6 + $0x1a0] sm:$0xff]
    %v668 = vld [vmem:[#allocation6 + $0x1a8] sm:$0xff]
    %v669 = vld [vmem:[#allocation6 + $0x1b0] sm:$0xff]
    %v670 = vld [vmem:[#allocation6 + $0x1b8] sm:$0xff]
    %v671 = vld [vmem:[#allocation6 + $0x1c0] sm:$0xff]
    %v672 = vld [vmem:[#allocation6 + $0x1c8] sm:$0xff]
    %v673 = vld [vmem:[#allocation6 + $0x1d0] sm:$0xff]
    %v674 = vld [vmem:[#allocation6 + $0x1d8] sm:$0xff]
    %v675 = vld [vmem:[#allocation6 + $0x1e0] sm:$0xff]
    %v676 = vld [vmem:[#allocation6 + $0x1e8] sm:$0xff]
    %v677 = vld [vmem:[#allocation6 + $0x1f0] sm:$0xff]
    %v678 = vld [vmem:[#allocation6 + $0x1f8] sm:$0xff]
    %v679 = vld [vmem:[%s10] sm:$0x1]
    %v681 = vlaneseq
    %v682 = vshrl.u32 %v681, 7
    %v683 = vsub.s32 0, %v682
    %v684 = vrot.slane %v679, %v683
    %686 = vmatprep.subr.mxu0 0.0
    %687 = vmatpush1.msra.mxu0 %v615
    %688 = vmatprep.subr.mxu0 0.0
    %689 = vmatpush1.msra.mxu0 %v616
    %690 = vmatprep.subr.mxu0 0.0
    %691 = vmatpush1.msra.mxu0 %v617
    %692 = vmatprep.subr.mxu0 0.0
    %693 = vmatpush1.msra.mxu0 %v618
    %694 = vmatprep.subr.mxu0 0.0
    %695 = vmatpush1.msra.mxu0 %v619
    %696 = vmatprep.subr.mxu0 0.0
    %697 = vmatpush1.msra.mxu0 %v620
    %698 = vmatprep.subr.mxu0 0.0
    %699 = vmatpush1.msra.mxu0 %v621
    %700 = vmatprep.subr.mxu0 0.0
    %701 = vmatpush1.msra.mxu0 %v622
    %702 = vmatprep.subr.mxu0 0.0
    %703 = vmatpush1.msra.mxu0 %v623
    %704 = vmatprep.subr.mxu0 0.0
    %705 = vmatpush1.msra.mxu0 %v624
    %706 = vmatprep.subr.mxu0 0.0
    %707 = vmatpush1.msra.mxu0 %v625
    %708 = vmatprep.subr.mxu0 0.0
    %709 = vmatpush1.msra.mxu0 %v626
    %710 = vmatprep.subr.mxu0 0.0
    %711 = vmatpush1.msra.mxu0 %v627
    %712 = vmatprep.subr.mxu0 0.0
    %713 = vmatpush1.msra.mxu0 %v628
    %714 = vmatprep.subr.mxu0 0.0
    %715 = vmatpush1.msra.mxu0 %v629
    %716 = vmatprep.subr.mxu0 0.0
    %717 = vmatpush1.msra.mxu0 %v630
    %718 = vmatprep.subr.mxu0 0.0
    %719 = vmatpush1.msra.mxu0 %v631
    %720 = vmatprep.subr.mxu0 0.0
    %721 = vmatpush1.msra.mxu0 %v632
    %722 = vmatprep.subr.mxu0 0.0
    %723 = vmatpush1.msra.mxu0 %v633
    %724 = vmatprep.subr.mxu0 0.0
    %725 = vmatpush1.msra.mxu0 %v634
    %726 = vmatprep.subr.mxu0 0.0
    %727 = vmatpush1.msra.mxu0 %v635
    %728 = vmatprep.subr.mxu0 0.0
    %729 = vmatpush1.msra.mxu0 %v636
    %730 = vmatprep.subr.mxu0 0.0
    %731 = vmatpush1.msra.mxu0 %v637
    %732 = vmatprep.subr.mxu0 0.0
    %733 = vmatpush1.msra.mxu0 %v638
    %734 = vmatprep.subr.mxu0 0.0
    %735 = vmatpush1.msra.mxu0 %v639
    %736 = vmatprep.subr.mxu0 0.0
    %737 = vmatpush1.msra.mxu0 %v640
    %738 = vmatprep.subr.mxu0 0.0
    %739 = vmatpush1.msra.mxu0 %v641
    %740 = vmatprep.subr.mxu0 0.0
    %741 = vmatpush1.msra.mxu0 %v642
    %742 = vmatprep.subr.mxu0 0.0
    %743 = vmatpush1.msra.mxu0 %v643
    %744 = vmatprep.subr.mxu0 0.0
    %745 = vmatpush1.msra.mxu0 %v644
    %746 = vmatprep.subr.mxu0 0.0
    %747 = vmatpush1.msra.mxu0 %v645
    %748 = vmatprep.subr.mxu0 0.0
    %749 = vmatpush1.msra.mxu0 %v646
    %750 = vmatprep.mubr.f32.mxu0 %v608
    %751 = vmatmul.mubr.f32.gmra.mrb[0].mxu0 %v607
    %v752 = vpop.f32.mrb[0].mxu0
    %v753 = vadd.f32 %v684, %v752
    %v754 = vpop.f32.mrb[0].mxu0
    %755 = vmatprep.mubr.f32.mxu0 %v612
    %756 = vmatmul.mubr.f32.gmra.mrb[0].mxu0 %v611
    %v757 = vpop.f32.mrb[0].mxu0
    %v758 = vadd.f32 %v684, %v757
    %v759 = vpop.f32.mrb[0].mxu0
    %760 = vdwg.mxu0
    %761 = vmatprep.subr.mxu0 0.0
    %762 = vmatpush1.msra.mxu0 %v647
    %763 = vmatprep.subr.mxu0 0.0
    %764 = vmatpush1.msra.mxu0 %v648
    %765 = vmatprep.subr.mxu0 0.0
    %766 = vmatpush1.msra.mxu0 %v649
    %767 = vmatprep.subr.mxu0 0.0
    %768 = vmatpush1.msra.mxu0 %v650
    %769 = vmatprep.subr.mxu0 0.0
    %770 = vmatpush1.msra.mxu0 %v651
    %771 = vmatprep.subr.mxu0 0.0
    %772 = vmatpush1.msra.mxu0 %v652
    %773 = vmatprep.subr.mxu0 0.0
    %774 = vmatpush1.msra.mxu0 %v653
    %775 = vmatprep.subr.mxu0 0.0
    %776 = vmatpush1.msra.mxu0 %v654
    %777 = vmatprep.subr.mxu0 0.0
    %778 = vmatpush1.msra.mxu0 %v655
    %779 = vmatprep.subr.mxu0 0.0
    %780 = vmatpush1.msra.mxu0 %v656
    %781 = vmatprep.subr.mxu0 0.0
    %782 = vmatpush1.msra.mxu0 %v657
    %783 = vmatprep.subr.mxu0 0.0
    %784 = vmatpush1.msra.mxu0 %v658
    %785 = vmatprep.subr.mxu0 0.0
    %786 = vmatpush1.msra.mxu0 %v659
    %787 = vmatprep.subr.mxu0 0.0
    %788 = vmatpush1.msra.mxu0 %v660
    %789 = vmatprep.subr.mxu0 0.0
    %790 = vmatpush1.msra.mxu0 %v661
    %791 = vmatprep.subr.mxu0 0.0
    %792 = vmatpush1.msra.mxu0 %v662
    %793 = vmatprep.subr.mxu0 0.0
    %794 = vmatpush1.msra.mxu0 %v663
    %795 = vmatprep.subr.mxu0 0.0
    %796 = vmatpush1.msra.mxu0 %v664
    %797 = vmatprep.subr.mxu0 0.0
    %798 = vmatpush1.msra.mxu0 %v665
    %799 = vmatprep.subr.mxu0 0.0
    %800 = vmatpush1.msra.mxu0 %v666
    %801 = vmatprep.subr.mxu0 0.0
    %802 = vmatpush1.msra.mxu0 %v667
    %803 = vmatprep.subr.mxu0 0.0
    %804 = vmatpush1.msra.mxu0 %v668
    %805 = vmatprep.subr.mxu0 0.0
    %806 = vmatpush1.msra.mxu0 %v669
    %807 = vmatprep.subr.mxu0 0.0
    %808 = vmatpush1.msra.mxu0 %v670
    %809 = vmatprep.subr.mxu0 0.0
    %810 = vmatpush1.msra.mxu0 %v671
    %811 = vmatprep.subr.mxu0 0.0
    %812 = vmatpush1.msra.mxu0 %v672
    %813 = vmatprep.subr.mxu0 0.0
    %814 = vmatpush1.msra.mxu0 %v673
    %815 = vmatprep.subr.mxu0 0.0
    %816 = vmatpush1.msra.mxu0 %v674
    %817 = vmatprep.subr.mxu0 0.0
    %818 = vmatpush1.msra.mxu0 %v675
    %819 = vmatprep.subr.mxu0 0.0
    %820 = vmatpush1.msra.mxu0 %v676
    %821 = vmatprep.subr.mxu0 0.0
    %822 = vmatpush1.msra.mxu0 %v677
    %823 = vmatprep.subr.mxu0 0.0
    %824 = vmatpush1.msra.mxu0 %v678
    %825 = vmatprep.mubr.f32.mxu0 %v610
    %826 = vmatmul.mubr.f32.gmra.mrb[0].mxu0 %v609
    %v827 = vpop.f32.mrb[0].mxu0
    %v828 = vadd.f32 %v753, %v827
    %v829 = vpop.f32.mrb[0].mxu0
    %830 = vmatprep.mubr.f32.mxu0 %v614
    %831 = vmatmul.mubr.f32.gmra.mrb[0].mxu0 %v613
    %v832 = vpop.f32.mrb[0].mxu0
    %v833 = vadd.f32 %v758, %v832
    %v834 = vpop.f32.mrb[0].mxu0
    %835 = vdwg.mxu0
    %836 = vst [vmem:[%s11] sm:$0xff] %v828
    %837 = vst [vmem:[%s11 + $0x8] sm:$0xff] %v833
    %v838 = vlaneseq
    %v839 = vshrl.u32 %v838, 7
    %v840 = vadd.s32 %v839, 8
    %s841 = smul.u32 0, 16
    %v842 = vstv %s841
    %v843 = vadd.s32 %v839, %v842
    %v844 = vadd.s32 %v840, %v842
    %vm845 = vcmp.lt.s32.totalorder %v843, 8
    %vm846 = vcmp.lt.s32.totalorder %v844, 8
    %v847 = vsel %vm845, 1, 0
    %v848 = vsel %vm846, 1, 0
    %v849 = vcvt.s32.f32 %v847
    %v850 = vcvt.s32.f32 %v848
    %v851 = vmul.f32 %v828, %v849
    %v852 = vmul.f32 %v833, %v850
    %855 = vrot.lane.b32.xlu0 %v851, 124
    %v856 = vpop.permute.xlu0 %855
    %857 = vrot.lane.b32.xlu0 %v852, 124
    %v858 = vpop.permute.xlu0 %857
    %vm861 = vcmask 7168
    %v862 = vsel %vm861, %v856, 0.0
    %v863 = vsel %vm861, %v858, 0.0
    %v864 = vadd.f32 %v862, %v863
    %865 = vadd.xlane.f32.xlu0 %v864
    %v866 = vpop.xlane.xlu0 %865
    %v867 = vrot.slane %v866, 4
    %v868 = vadd.f32 %v866, %v867
    %v869 = vrot.slane %v868, 2
    %v870 = vadd.f32 %v868, %v869
    %v871 = vrot.slane %v870, 1
    %v872 = vadd.f32 %v870, %v871
    %s873 = vtos %v872
    %v874 = vstv %s873
    %875 = vst [vmem:[%s12] sm:$0xff] %v874
    // Predicated region
    $region58: #{dueling_q_forward.1} parent=1 // pred_check
      _
    $region59: #{dueling_q_forward.1} parent=1 // pred_check_branch
      %877 = sbr.rel (0) target = $region61
    $region60: #{dueling_q_forward.1} parent=1 // pred_region
      _
    $region61: #{dueling_q_forward.1} parent=1 // pred_fallthru
      _
    // Predicated region
    $region62: #{dueling_q_forward.1} parent=1 // pred_check
      _
    $region63: #{dueling_q_forward.1} parent=1 // pred_check_branch
      %879 = sbr.rel (0) target = $region65
    $region64: #{dueling_q_forward.1} parent=1 // pred_region
      _
    $region65: #{dueling_q_forward.1} parent=1 // pred_fallthru
      _
    // Predicated region
    $region66: #{dueling_q_forward.1} parent=1 // pred_check
      _
    $region67: #{dueling_q_forward.1} parent=1 // pred_check_branch
      %881 = sbr.rel (0) target = $region69
    $region68: #{dueling_q_forward.1} parent=1 // pred_region
      _
    $region69: #{dueling_q_forward.1} parent=1 // pred_fallthru
      _
    // Predicated region
    $region70: #{dueling_q_forward.1} parent=1 // pred_check
      _
    $region71: #{dueling_q_forward.1} parent=1 // pred_check_branch
      %883 = sbr.rel (0) target = $region73
    $region72: #{dueling_q_forward.1} parent=1 // pred_region
      _
    $region73: #{dueling_q_forward.1} parent=1 // pred_fallthru
      _
    %884 = vsyncpa [#allocation3], 1
    %885 = vsyncpa [#allocation5], 1

</llo_original>
